<compile_context>
chip_gen: v7x
topology: tpu7x:2x2x1
jax: 0.10.0
libtpu: 0.0.40
codegen_flags: <defaults>
</compile_context>

<pallas_src>
import jax
import jax.numpy as jnp
from jax.experimental import pallas as pl
from jax.experimental.pallas import tpu as pltpu

IN_DIM = 1024
MAX_TILE_N = 512  # rows per grid step; 512 * 1024 * 4 B = 2 MiB of `h` per step


def tagger_kernel(h_ref, w_ref, b_ref, o_ref):
    # h_ref: (tile_n, IN_DIM) f32 VMEM (streamed per grid step)
    # w_ref: (IN_DIM, 1)      f32 VMEM (same block every step)
    # b_ref: (1,)             f32 SMEM scalar
    # o_ref: (tile_n, 1)      f32 VMEM
    logits = jnp.dot(h_ref[...], w_ref[...],
                     preferred_element_type=jnp.float32)
    o_ref[...] = jax.nn.sigmoid(logits + b_ref[0]).astype(o_ref.dtype)


def tagger_forward(h, weight, bias):
    """h: [..., IN_DIM] float32 -> sigmoid(h @ weight + bias): [..., 1]."""
    lead_shape = h.shape[:-1]
    h2d = h.reshape(-1, IN_DIM)
    n = h2d.shape[0]

    # Row tile: as large as MAX_TILE_N, but no larger than N rounded up to the
    # 8-row sublane granularity (keeps tiny inputs cheap and the grid >= 1).
    tile_n = min(MAX_TILE_N, max(8, ((n + 7) // 8) * 8))
    n_pad = pl.cdiv(n, tile_n) * tile_n
    if n_pad != n:
        h2d = jnp.pad(h2d, ((0, n_pad - n), (0, 0)))

    w2d = weight.reshape(IN_DIM, 1).astype(h2d.dtype)
    b1d = bias.reshape(1).astype(jnp.float32)

    # TODO(synk): for a further ~2x on this HBM-bound op, accept/cast `h` to
    # bfloat16 (accumulation stays f32 via preferred_element_type) or fuse the
    # 1024->1 projection into the producer of `h` so it never re-reads HBM.
    out = pl.pallas_call(
        tagger_kernel,
        out_shape=jax.ShapeDtypeStruct((n_pad, 1), h2d.dtype),
        grid_spec=pltpu.PrefetchScalarGridSpec(
            num_scalar_prefetch=0,
            grid=(n_pad // tile_n,),
            in_specs=[
                pl.BlockSpec((tile_n, IN_DIM), lambda i: (i, 0)),
                pl.BlockSpec((IN_DIM, 1), lambda i: (0, 0)),
                pl.BlockSpec(memory_space=pltpu.MemorySpace.SMEM),
            ],
            out_specs=pl.BlockSpec((tile_n, 1), lambda i: (i, 0)),
        ),
        compiler_params=pltpu.CompilerParams(
            dimension_semantics=("parallel",)),
    )(h2d, w2d, b1d)

    return out[:n].reshape(*lead_shape, 1)


def init_tagger_params(key):
    # Mirrors nn.Linear default init: U(-1/sqrt(in_dim), 1/sqrt(in_dim)).
    kw, kb = jax.random.split(key)
    bound = 1.0 / jnp.sqrt(jnp.float32(IN_DIM))
    weight = jax.random.uniform(kw, (IN_DIM, 1), jnp.float32, -bound, bound)
    bias = jax.random.uniform(kb, (1,), jnp.float32, -bound, bound)
    return weight, bias


if __name__ == "__main__":
    key = jax.random.PRNGKey(0)
    k_h, k_h2, k_p = jax.random.split(key, 3)

    weight, bias = init_tagger_params(k_p)

    # Small example: batch=2, seq=8, hidden=1024 (in_dim fixed by the module).
    batch, seq = 2, 8
    h = jax.random.normal(k_h, (batch, seq, IN_DIM), jnp.float32)
    tag_logits = tagger_forward(h, weight, bias)
    tag_logits = jax.block_until_ready(tag_logits)
    ref = jax.nn.sigmoid(h @ weight + bias)
    assert tag_logits.shape == (batch, seq, 1)
    assert jnp.allclose(tag_logits, ref, atol=1e-5, rtol=1e-5)

    # Second check: leading size not a multiple of 8 exercises the padding path.
    batch2, seq2 = 2, 13
    h2 = jax.random.normal(k_h2, (batch2, seq2, IN_DIM), jnp.float32)
    tag_logits2 = tagger_forward(h2, weight, bias)
    tag_logits2 = jax.block_until_ready(tag_logits2)
    ref2 = jax.nn.sigmoid(h2 @ weight + bias)
    assert tag_logits2.shape == (batch2, seq2, 1)
    assert jnp.allclose(tag_logits2, ref2, atol=1e-5, rtol=1e-5)

    print("KERNEL_OK")
</pallas_src>

<mosaic_0001>
module attributes {stable_mosaic.version = 11 : i64} {
  func.func @tagger_kernel(%arg0: i32, %arg1: memref<16x1024xf32, #tpu.memory_space<vmem>>, %arg2: memref<1024x1xf32, #tpu.memory_space<vmem>>, %arg3: memref<1xf32, #tpu.memory_space<smem>>, %arg4: memref<16x1xf32, #tpu.memory_space<vmem>>) attributes {dimension_semantics = [#tpu.dimension_semantics<parallel>], iteration_bounds = array<i64: 1>, scalar_prefetch = 0 : i64, scratch_operands = 0 : i64, tpu.core_type = #tpu.core_type<tc>, window_params = [{transform_indices = @transform_0, window_bounds = array<i64: 16, 1024>}, {pipeline_mode = #tpu.pipeline_mode<synchronous>, transform_indices = @transform_1, window_bounds = array<i64: 1024, 1>}, {transform_indices = @transform_2, window_bounds = array<i64: 1>}, {transform_indices = @transform_3, window_bounds = array<i64: 16, 1>}]} {
    %c0 = arith.constant 0 : index
    %c0_0 = arith.constant 0 : index
    %0 = vector.load %arg1[%c0, %c0_0] : memref<16x1024xf32, #tpu.memory_space<vmem>>, vector<16x1024xf32>
    %c0_1 = arith.constant 0 : index
    %c0_2 = arith.constant 0 : index
    %1 = vector.load %arg2[%c0_1, %c0_2] : memref<1024x1xf32, #tpu.memory_space<vmem>>, vector<1024x1xf32>
    %cst = arith.constant dense<0.000000e+00> : vector<16x1xf32>
    %2 = tpu.matmul %0, %1, %cst {dimension_numbers = #tpu.dot_dimension_numbers<[1], [0], [0], [1], [0, 0, 1, 1], [], []>} : vector<16x1024xf32>, vector<1024x1xf32>, vector<16x1xf32> -> vector<16x1xf32>
    %c0_3 = arith.constant 0 : index
    %3 = memref.load %arg3[%c0_3] : memref<1xf32, #tpu.memory_space<smem>>
    %4 = vector.broadcast %3 : f32 to vector<16x1xf32>
    %5 = arith.addf %2, %4 : vector<16x1xf32>
    %6 = arith.negf %5 : vector<16x1xf32>
    %7 = math.exp %6 : vector<16x1xf32>
    %cst_4 = arith.constant 1.000000e+00 : f32
    %8 = vector.broadcast %cst_4 : f32 to vector<16x1xf32>
    %9 = arith.addf %8, %7 : vector<16x1xf32>
    %10 = arith.divf %8, %9 : vector<16x1xf32>
    %c0_5 = arith.constant 0 : index
    %c0_6 = arith.constant 0 : index
    %11 = vector.load %arg4[%c0_5, %c0_6] : memref<16x1xf32, #tpu.memory_space<vmem>>, vector<16x1xf32>
    tpu.vector_store %arg4[%c0_5, %c0_6], %10 {strides = array<i32>} : memref<16x1xf32, #tpu.memory_space<vmem>>, vector<16x1xf32>,
    return
  }
  func.func @transform_0(%arg0: i32) -> (i32, i32) {
    %c0_i32 = arith.constant 0 : i32
    %c0_i32_0 = arith.constant 0 : i32
    return %arg0, %c0_i32 : i32, i32
  }
  func.func @transform_1(%arg0: i32) -> (i32, i32) {
    %c0_i32 = arith.constant 0 : i32
    %c0_i32_0 = arith.constant 0 : i32
    %c0_i32_1 = arith.constant 0 : i32
    return %c0_i32, %c0_i32_0 : i32, i32
  }
  func.func @transform_2(%arg0: i32) -> i32 {
    %c0_i32 = arith.constant 0 : i32
    %c0_i32_0 = arith.constant 0 : i32
    return %c0_i32 : i32
  }
  func.func @transform_3(%arg0: i32) -> (i32, i32) {
    %c0_i32 = arith.constant 0 : i32
    %c0_i32_0 = arith.constant 0 : i32
    return %arg0, %c0_i32 : i32, i32
  }
}

</mosaic_0001>

<llo_original>
// kernel: tpu_custom_call.1
$region0: #{tpu_custom_call.1}
  #allocation0 [shape = 'u32[]', space=smem, size = 0x4, offset = 0x4, fixed_abs, tag = 'smem constant byte address 0x4 - core index']
  #allocation1 [shape = 'u32[144,128]{1,0:T(1,128)}', space=vmem, size = 0x12000, scoped, tag = 'internal scratch']
  #allocation2 [shape = 'f32[1]{0:T(128)S(6)}', space=smem, size = 0x200, scoped, tag = 'scoped memory for tpu_custom_call.1']
  %s0 = inlined_call_operand.vmem [shape: f32[16,1024], index: 0, kind: input, shape index: {}]
  %s1 = inlined_call_operand.vmem [shape: f32[1024,1], index: 1, kind: input, shape index: {}]
  %s2 = inlined_call_operand.<no memory space> [shape: f32[1], index: 2, kind: input, shape index: {}]
  %s3 = inlined_call_operand.vmem [shape: f32[16,1], index: 3, kind: output, shape index: {}]
  %s4 = sld [smem:[#allocation0]]
  $region22: #{tpu_custom_call.1} parent=0
    _
  %s6 = ssub.s32 1, %s4
  %s7 = scalar_select 0, %s6, %s4
  %8 = sst [smem:[#allocation2]] %s2
  // Predicated region
  $region2: #{tpu_custom_call.1} parent=0 // pred_check
    _
  $region3: #{tpu_custom_call.1} parent=0 // pred_check_branch
    %10 = sbr.rel (0) target = $region5
  $region4: #{tpu_custom_call.1} parent=0 // pred_region
    _
  $region5: #{tpu_custom_call.1} parent=0 // pred_fallthru
    _
  // Predicated region
  $region6: #{tpu_custom_call.1} parent=0 // pred_check
    _
  $region7: #{tpu_custom_call.1} parent=0 // pred_check_branch
    %12 = sbr.rel (0) target = $region9
  $region8: #{tpu_custom_call.1} parent=0 // pred_region
    _
  $region9: #{tpu_custom_call.1} parent=0 // pred_fallthru
    _
  // Predicated region
  $region10: #{tpu_custom_call.1} parent=0 // pred_check
    _
  $region11: #{tpu_custom_call.1} parent=0 // pred_check_branch
    %14 = sbr.rel (0) target = $region13
  $region12: #{tpu_custom_call.1} parent=0 // pred_region
    _
  $region13: #{tpu_custom_call.1} parent=0 // pred_fallthru
    _
  %v15 = vld [vmem:[%s0] sm:$0xff]
  %v16 = vld [vmem:[%s0 + $0x8] sm:$0xff]
  %v17 = vld [vmem:[%s0 + $0x10] sm:$0xff]
  %v18 = vld [vmem:[%s0 + $0x18] sm:$0xff]
  %v19 = vld [vmem:[%s0 + $0x20] sm:$0xff]
  %v20 = vld [vmem:[%s0 + $0x28] sm:$0xff]
  %v21 = vld [vmem:[%s0 + $0x30] sm:$0xff]
  %v22 = vld [vmem:[%s0 + $0x38] sm:$0xff]
  %v23 = vld [vmem:[%s0 + $0x40] sm:$0xff]
  %v24 = vld [vmem:[%s0 + $0x48] sm:$0xff]
  %v25 = vld [vmem:[%s0 + $0x50] sm:$0xff]
  %v26 = vld [vmem:[%s0 + $0x58] sm:$0xff]
  %v27 = vld [vmem:[%s0 + $0x60] sm:$0xff]
  %v28 = vld [vmem:[%s0 + $0x68] sm:$0xff]
  %v29 = vld [vmem:[%s0 + $0x70] sm:$0xff]
  %v30 = vld [vmem:[%s0 + $0x78] sm:$0xff]
  %v31 = vld [vmem:[%s1] sm:$0xff]
  %v32 = vld [vmem:[%s1 + $0x8] sm:$0xff]
  %v33 = vld [vmem:[%s1 + $0x10] sm:$0xff]
  %v34 = vld [vmem:[%s1 + $0x18] sm:$0xff]
  %v35 = vld [vmem:[%s1 + $0x20] sm:$0xff]
  %v36 = vld [vmem:[%s1 + $0x28] sm:$0xff]
  %v37 = vld [vmem:[%s1 + $0x30] sm:$0xff]
  %v38 = vld [vmem:[%s1 + $0x38] sm:$0xff]
  %v39 = vld [vmem:[%s1 + $0x40] sm:$0xff]
  %v40 = vld [vmem:[%s1 + $0x48] sm:$0xff]
  %v41 = vld [vmem:[%s1 + $0x50] sm:$0xff]
  %v42 = vld [vmem:[%s1 + $0x58] sm:$0xff]
  %v43 = vld [vmem:[%s1 + $0x60] sm:$0xff]
  %v44 = vld [vmem:[%s1 + $0x68] sm:$0xff]
  %v45 = vld [vmem:[%s1 + $0x70] sm:$0xff]
  %v46 = vld [vmem:[%s1 + $0x78] sm:$0xff]
  %v47 = vld [vmem:[%s1 + $0x80] sm:$0xff]
  %v48 = vld [vmem:[%s1 + $0x88] sm:$0xff]
  %v49 = vld [vmem:[%s1 + $0x90] sm:$0xff]
  %v50 = vld [vmem:[%s1 + $0x98] sm:$0xff]
  %v51 = vld [vmem:[%s1 + $0xa0] sm:$0xff]
  %v52 = vld [vmem:[%s1 + $0xa8] sm:$0xff]
  %v53 = vld [vmem:[%s1 + $0xb0] sm:$0xff]
  %v54 = vld [vmem:[%s1 + $0xb8] sm:$0xff]
  %v55 = vld [vmem:[%s1 + $0xc0] sm:$0xff]
  %v56 = vld [vmem:[%s1 + $0xc8] sm:$0xff]
  %v57 = vld [vmem:[%s1 + $0xd0] sm:$0xff]
  %v58 = vld [vmem:[%s1 + $0xd8] sm:$0xff]
  %v59 = vld [vmem:[%s1 + $0xe0] sm:$0xff]
  %v60 = vld [vmem:[%s1 + $0xe8] sm:$0xff]
  %v61 = vld [vmem:[%s1 + $0xf0] sm:$0xff]
  %v62 = vld [vmem:[%s1 + $0xf8] sm:$0xff]
  %v63 = vld [vmem:[%s1 + $0x100] sm:$0xff]
  %v64 = vld [vmem:[%s1 + $0x108] sm:$0xff]
  %v65 = vld [vmem:[%s1 + $0x110] sm:$0xff]
  %v66 = vld [vmem:[%s1 + $0x118] sm:$0xff]
  %v67 = vld [vmem:[%s1 + $0x120] sm:$0xff]
  %v68 = vld [vmem:[%s1 + $0x128] sm:$0xff]
  %v69 = vld [vmem:[%s1 + $0x130] sm:$0xff]
  %v70 = vld [vmem:[%s1 + $0x138] sm:$0xff]
  %v71 = vld [vmem:[%s1 + $0x140] sm:$0xff]
  %v72 = vld [vmem:[%s1 + $0x148] sm:$0xff]
  %v73 = vld [vmem:[%s1 + $0x150] sm:$0xff]
  %v74 = vld [vmem:[%s1 + $0x158] sm:$0xff]
  %v75 = vld [vmem:[%s1 + $0x160] sm:$0xff]
  %v76 = vld [vmem:[%s1 + $0x168] sm:$0xff]
  %v77 = vld [vmem:[%s1 + $0x170] sm:$0xff]
  %v78 = vld [vmem:[%s1 + $0x178] sm:$0xff]
  %v79 = vld [vmem:[%s1 + $0x180] sm:$0xff]
  %v80 = vld [vmem:[%s1 + $0x188] sm:$0xff]
  %v81 = vld [vmem:[%s1 + $0x190] sm:$0xff]
  %v82 = vld [vmem:[%s1 + $0x198] sm:$0xff]
  %v83 = vld [vmem:[%s1 + $0x1a0] sm:$0xff]
  %v84 = vld [vmem:[%s1 + $0x1a8] sm:$0xff]
  %v85 = vld [vmem:[%s1 + $0x1b0] sm:$0xff]
  %v86 = vld [vmem:[%s1 + $0x1b8] sm:$0xff]
  %v87 = vld [vmem:[%s1 + $0x1c0] sm:$0xff]
  %v88 = vld [vmem:[%s1 + $0x1c8] sm:$0xff]
  %v89 = vld [vmem:[%s1 + $0x1d0] sm:$0xff]
  %v90 = vld [vmem:[%s1 + $0x1d8] sm:$0xff]
  %v91 = vld [vmem:[%s1 + $0x1e0] sm:$0xff]
  %v92 = vld [vmem:[%s1 + $0x1e8] sm:$0xff]
  %v93 = vld [vmem:[%s1 + $0x1f0] sm:$0xff]
  %v94 = vld [vmem:[%s1 + $0x1f8] sm:$0xff]
  %v95 = vld [vmem:[%s1 + $0x200] sm:$0xff]
  %v96 = vld [vmem:[%s1 + $0x208] sm:$0xff]
  %v97 = vld [vmem:[%s1 + $0x210] sm:$0xff]
  %v98 = vld [vmem:[%s1 + $0x218] sm:$0xff]
  %v99 = vld [vmem:[%s1 + $0x220] sm:$0xff]
  %v100 = vld [vmem:[%s1 + $0x228] sm:$0xff]
  %v101 = vld [vmem:[%s1 + $0x230] sm:$0xff]
  %v102 = vld [vmem:[%s1 + $0x238] sm:$0xff]
  %v103 = vld [vmem:[%s1 + $0x240] sm:$0xff]
  %v104 = vld [vmem:[%s1 + $0x248] sm:$0xff]
  %v105 = vld [vmem:[%s1 + $0x250] sm:$0xff]
  %v106 = vld [vmem:[%s1 + $0x258] sm:$0xff]
  %v107 = vld [vmem:[%s1 + $0x260] sm:$0xff]
  %v108 = vld [vmem:[%s1 + $0x268] sm:$0xff]
  %v109 = vld [vmem:[%s1 + $0x270] sm:$0xff]
  %v110 = vld [vmem:[%s1 + $0x278] sm:$0xff]
  %v111 = vld [vmem:[%s1 + $0x280] sm:$0xff]
  %v112 = vld [vmem:[%s1 + $0x288] sm:$0xff]
  %v113 = vld [vmem:[%s1 + $0x290] sm:$0xff]
  %v114 = vld [vmem:[%s1 + $0x298] sm:$0xff]
  %v115 = vld [vmem:[%s1 + $0x2a0] sm:$0xff]
  %v116 = vld [vmem:[%s1 + $0x2a8] sm:$0xff]
  %v117 = vld [vmem:[%s1 + $0x2b0] sm:$0xff]
  %v118 = vld [vmem:[%s1 + $0x2b8] sm:$0xff]
  %v119 = vld [vmem:[%s1 + $0x2c0] sm:$0xff]
  %v120 = vld [vmem:[%s1 + $0x2c8] sm:$0xff]
  %v121 = vld [vmem:[%s1 + $0x2d0] sm:$0xff]
  %v122 = vld [vmem:[%s1 + $0x2d8] sm:$0xff]
  %v123 = vld [vmem:[%s1 + $0x2e0] sm:$0xff]
  %v124 = vld [vmem:[%s1 + $0x2e8] sm:$0xff]
  %v125 = vld [vmem:[%s1 + $0x2f0] sm:$0xff]
  %v126 = vld [vmem:[%s1 + $0x2f8] sm:$0xff]
  %v127 = vld [vmem:[%s1 + $0x300] sm:$0xff]
  %v128 = vld [vmem:[%s1 + $0x308] sm:$0xff]
  %v129 = vld [vmem:[%s1 + $0x310] sm:$0xff]
  %v130 = vld [vmem:[%s1 + $0x318] sm:$0xff]
  %v131 = vld [vmem:[%s1 + $0x320] sm:$0xff]
  %v132 = vld [vmem:[%s1 + $0x328] sm:$0xff]
  %v133 = vld [vmem:[%s1 + $0x330] sm:$0xff]
  %v134 = vld [vmem:[%s1 + $0x338] sm:$0xff]
  %v135 = vld [vmem:[%s1 + $0x340] sm:$0xff]
  %v136 = vld [vmem:[%s1 + $0x348] sm:$0xff]
  %v137 = vld [vmem:[%s1 + $0x350] sm:$0xff]
  %v138 = vld [vmem:[%s1 + $0x358] sm:$0xff]
  %v139 = vld [vmem:[%s1 + $0x360] sm:$0xff]
  %v140 = vld [vmem:[%s1 + $0x368] sm:$0xff]
  %v141 = vld [vmem:[%s1 + $0x370] sm:$0xff]
  %v142 = vld [vmem:[%s1 + $0x378] sm:$0xff]
  %v143 = vld [vmem:[%s1 + $0x380] sm:$0xff]
  %v144 = vld [vmem:[%s1 + $0x388] sm:$0xff]
  %v145 = vld [vmem:[%s1 + $0x390] sm:$0xff]
  %v146 = vld [vmem:[%s1 + $0x398] sm:$0xff]
  %v147 = vld [vmem:[%s1 + $0x3a0] sm:$0xff]
  %v148 = vld [vmem:[%s1 + $0x3a8] sm:$0xff]
  %v149 = vld [vmem:[%s1 + $0x3b0] sm:$0xff]
  %v150 = vld [vmem:[%s1 + $0x3b8] sm:$0xff]
  %v151 = vld [vmem:[%s1 + $0x3c0] sm:$0xff]
  %v152 = vld [vmem:[%s1 + $0x3c8] sm:$0xff]
  %v153 = vld [vmem:[%s1 + $0x3d0] sm:$0xff]
  %v154 = vld [vmem:[%s1 + $0x3d8] sm:$0xff]
  %v155 = vld [vmem:[%s1 + $0x3e0] sm:$0xff]
  %v156 = vld [vmem:[%s1 + $0x3e8] sm:$0xff]
  %v157 = vld [vmem:[%s1 + $0x3f0] sm:$0xff]
  %v158 = vld [vmem:[%s1 + $0x3f8] sm:$0xff]
  %s159 = sld [smem:[#allocation2]]
  %v160 = vstv %s159
  %161 = vmatprep.subr.mxu0 0.0
  %162 = vmatpush1.msra.mxu0 %v31
  %163 = vmatprep.subr.mxu0 0.0
  %164 = vmatpush1.msra.mxu0 %v32
  %165 = vmatprep.subr.mxu0 0.0
  %166 = vmatpush1.msra.mxu0 %v33
  %167 = vmatprep.subr.mxu0 0.0
  %168 = vmatpush1.msra.mxu0 %v34
  %169 = vmatprep.subr.mxu0 0.0
  %170 = vmatpush1.msra.mxu0 %v35
  %171 = vmatprep.subr.mxu0 0.0
  %172 = vmatpush1.msra.mxu0 %v36
  %173 = vmatprep.subr.mxu0 0.0
  %174 = vmatpush1.msra.mxu0 %v37
  %175 = vmatprep.subr.mxu0 0.0
  %176 = vmatpush1.msra.mxu0 %v38
  %177 = vmatprep.subr.mxu0 0.0
  %178 = vmatpush1.msra.mxu0 %v39
  %179 = vmatprep.subr.mxu0 0.0
  %180 = vmatpush1.msra.mxu0 %v40
  %181 = vmatprep.subr.mxu0 0.0
  %182 = vmatpush1.msra.mxu0 %v41
  %183 = vmatprep.subr.mxu0 0.0
  %184 = vmatpush1.msra.mxu0 %v42
  %185 = vmatprep.subr.mxu0 0.0
  %186 = vmatpush1.msra.mxu0 %v43
  %187 = vmatprep.subr.mxu0 0.0
  %188 = vmatpush1.msra.mxu0 %v44
  %189 = vmatprep.subr.mxu0 0.0
  %190 = vmatpush1.msra.mxu0 %v45
  %191 = vmatprep.subr.mxu0 0.0
  %192 = vmatpush1.msra.mxu0 %v46
  %193 = vmatprep.subr.mxu0 0.0
  %194 = vmatpush1.msra.mxu0 %v47
  %195 = vmatprep.subr.mxu0 0.0
  %196 = vmatpush1.msra.mxu0 %v48
  %197 = vmatprep.subr.mxu0 0.0
  %198 = vmatpush1.msra.mxu0 %v49
  %199 = vmatprep.subr.mxu0 0.0
  %200 = vmatpush1.msra.mxu0 %v50
  %201 = vmatprep.subr.mxu0 0.0
  %202 = vmatpush1.msra.mxu0 %v51
  %203 = vmatprep.subr.mxu0 0.0
  %204 = vmatpush1.msra.mxu0 %v52
  %205 = vmatprep.subr.mxu0 0.0
  %206 = vmatpush1.msra.mxu0 %v53
  %207 = vmatprep.subr.mxu0 0.0
  %208 = vmatpush1.msra.mxu0 %v54
  %209 = vmatprep.subr.mxu0 0.0
  %210 = vmatpush1.msra.mxu0 %v55
  %211 = vmatprep.subr.mxu0 0.0
  %212 = vmatpush1.msra.mxu0 %v56
  %213 = vmatprep.subr.mxu0 0.0
  %214 = vmatpush1.msra.mxu0 %v57
  %215 = vmatprep.subr.mxu0 0.0
  %216 = vmatpush1.msra.mxu0 %v58
  %217 = vmatprep.subr.mxu0 0.0
  %218 = vmatpush1.msra.mxu0 %v59
  %219 = vmatprep.subr.mxu0 0.0
  %220 = vmatpush1.msra.mxu0 %v60
  %221 = vmatprep.subr.mxu0 0.0
  %222 = vmatpush1.msra.mxu0 %v61
  %223 = vmatprep.subr.mxu0 0.0
  %224 = vmatpush1.msra.mxu0 %v62
  %225 = vmatprep.mubr.f32.mxu0 %v16
  %226 = vmatmul.mubr.f32.gmra.mrb[0].mxu0 %v15
  %v227 = vpop.f32.mrb[0].mxu0
  %v228 = vadd.f32 %v160, %v227
  %v229 = vpop.f32.mrb[0].mxu0
  %230 = vmatprep.mubr.f32.mxu0 %v24
  %231 = vmatmul.mubr.f32.gmra.mrb[0].mxu0 %v23
  %v232 = vpop.f32.mrb[0].mxu0
  %v233 = vadd.f32 %v160, %v232
  %v234 = vpop.f32.mrb[0].mxu0
  %235 = vdwg.mxu0
  %236 = vmatprep.subr.mxu0 0.0
  %237 = vmatpush1.msra.mxu0 %v63
  %238 = vmatprep.subr.mxu0 0.0
  %239 = vmatpush1.msra.mxu0 %v64
  %240 = vmatprep.subr.mxu0 0.0
  %241 = vmatpush1.msra.mxu0 %v65
  %242 = vmatprep.subr.mxu0 0.0
  %243 = vmatpush1.msra.mxu0 %v66
  %244 = vmatprep.subr.mxu0 0.0
  %245 = vmatpush1.msra.mxu0 %v67
  %246 = vmatprep.subr.mxu0 0.0
  %247 = vmatpush1.msra.mxu0 %v68
  %248 = vmatprep.subr.mxu0 0.0
  %249 = vmatpush1.msra.mxu0 %v69
  %250 = vmatprep.subr.mxu0 0.0
  %251 = vmatpush1.msra.mxu0 %v70
  %252 = vmatprep.subr.mxu0 0.0
  %253 = vmatpush1.msra.mxu0 %v71
  %254 = vmatprep.subr.mxu0 0.0
  %255 = vmatpush1.msra.mxu0 %v72
  %256 = vmatprep.subr.mxu0 0.0
  %257 = vmatpush1.msra.mxu0 %v73
  %258 = vmatprep.subr.mxu0 0.0
  %259 = vmatpush1.msra.mxu0 %v74
  %260 = vmatprep.subr.mxu0 0.0
  %261 = vmatpush1.msra.mxu0 %v75
  %262 = vmatprep.subr.mxu0 0.0
  %263 = vmatpush1.msra.mxu0 %v76
  %264 = vmatprep.subr.mxu0 0.0
  %265 = vmatpush1.msra.mxu0 %v77
  %266 = vmatprep.subr.mxu0 0.0
  %267 = vmatpush1.msra.mxu0 %v78
  %268 = vmatprep.subr.mxu0 0.0
  %269 = vmatpush1.msra.mxu0 %v79
  %270 = vmatprep.subr.mxu0 0.0
  %271 = vmatpush1.msra.mxu0 %v80
  %272 = vmatprep.subr.mxu0 0.0
  %273 = vmatpush1.msra.mxu0 %v81
  %274 = vmatprep.subr.mxu0 0.0
  %275 = vmatpush1.msra.mxu0 %v82
  %276 = vmatprep.subr.mxu0 0.0
  %277 = vmatpush1.msra.mxu0 %v83
  %278 = vmatprep.subr.mxu0 0.0
  %279 = vmatpush1.msra.mxu0 %v84
  %280 = vmatprep.subr.mxu0 0.0
  %281 = vmatpush1.msra.mxu0 %v85
  %282 = vmatprep.subr.mxu0 0.0
  %283 = vmatpush1.msra.mxu0 %v86
  %284 = vmatprep.subr.mxu0 0.0
  %285 = vmatpush1.msra.mxu0 %v87
  %286 = vmatprep.subr.mxu0 0.0
  %287 = vmatpush1.msra.mxu0 %v88
  %288 = vmatprep.subr.mxu0 0.0
  %289 = vmatpush1.msra.mxu0 %v89
  %290 = vmatprep.subr.mxu0 0.0
  %291 = vmatpush1.msra.mxu0 %v90
  %292 = vmatprep.subr.mxu0 0.0
  %293 = vmatpush1.msra.mxu0 %v91
  %294 = vmatprep.subr.mxu0 0.0
  %295 = vmatpush1.msra.mxu0 %v92
  %296 = vmatprep.subr.mxu0 0.0
  %297 = vmatpush1.msra.mxu0 %v93
  %298 = vmatprep.subr.mxu0 0.0
  %299 = vmatpush1.msra.mxu0 %v94
  %300 = vmatprep.mubr.f32.mxu0 %v18
  %301 = vmatmul.mubr.f32.gmra.mrb[0].mxu0 %v17
  %v302 = vpop.f32.mrb[0].mxu0
  %v303 = vadd.f32 %v228, %v302
  %v304 = vpop.f32.mrb[0].mxu0
  %305 = vmatprep.mubr.f32.mxu0 %v26
  %306 = vmatmul.mubr.f32.gmra.mrb[0].mxu0 %v25
  %v307 = vpop.f32.mrb[0].mxu0
  %v308 = vadd.f32 %v233, %v307
  %v309 = vpop.f32.mrb[0].mxu0
  %310 = vdwg.mxu0
  %311 = vmatprep.subr.mxu0 0.0
  %312 = vmatpush1.msra.mxu0 %v95
  %313 = vmatprep.subr.mxu0 0.0
  %314 = vmatpush1.msra.mxu0 %v96
  %315 = vmatprep.subr.mxu0 0.0
  %316 = vmatpush1.msra.mxu0 %v97
  %317 = vmatprep.subr.mxu0 0.0
  %318 = vmatpush1.msra.mxu0 %v98
  %319 = vmatprep.subr.mxu0 0.0
  %320 = vmatpush1.msra.mxu0 %v99
  %321 = vmatprep.subr.mxu0 0.0
  %322 = vmatpush1.msra.mxu0 %v100
  %323 = vmatprep.subr.mxu0 0.0
  %324 = vmatpush1.msra.mxu0 %v101
  %325 = vmatprep.subr.mxu0 0.0
  %326 = vmatpush1.msra.mxu0 %v102
  %327 = vmatprep.subr.mxu0 0.0
  %328 = vmatpush1.msra.mxu0 %v103
  %329 = vmatprep.subr.mxu0 0.0
  %330 = vmatpush1.msra.mxu0 %v104
  %331 = vmatprep.subr.mxu0 0.0
  %332 = vmatpush1.msra.mxu0 %v105
  %333 = vmatprep.subr.mxu0 0.0
  %334 = vmatpush1.msra.mxu0 %v106
  %335 = vmatprep.subr.mxu0 0.0
  %336 = vmatpush1.msra.mxu0 %v107
  %337 = vmatprep.subr.mxu0 0.0
  %338 = vmatpush1.msra.mxu0 %v108
  %339 = vmatprep.subr.mxu0 0.0
  %340 = vmatpush1.msra.mxu0 %v109
  %341 = vmatprep.subr.mxu0 0.0
  %342 = vmatpush1.msra.mxu0 %v110
  %343 = vmatprep.subr.mxu0 0.0
  %344 = vmatpush1.msra.mxu0 %v111
  %345 = vmatprep.subr.mxu0 0.0
  %346 = vmatpush1.msra.mxu0 %v112
  %347 = vmatprep.subr.mxu0 0.0
  %348 = vmatpush1.msra.mxu0 %v113
  %349 = vmatprep.subr.mxu0 0.0
  %350 = vmatpush1.msra.mxu0 %v114
  %351 = vmatprep.subr.mxu0 0.0
  %352 = vmatpush1.msra.mxu0 %v115
  %353 = vmatprep.subr.mxu0 0.0
  %354 = vmatpush1.msra.mxu0 %v116
  %355 = vmatprep.subr.mxu0 0.0
  %356 = vmatpush1.msra.mxu0 %v117
  %357 = vmatprep.subr.mxu0 0.0
  %358 = vmatpush1.msra.mxu0 %v118
  %359 = vmatprep.subr.mxu0 0.0
  %360 = vmatpush1.msra.mxu0 %v119
  %361 = vmatprep.subr.mxu0 0.0
  %362 = vmatpush1.msra.mxu0 %v120
  %363 = vmatprep.subr.mxu0 0.0
  %364 = vmatpush1.msra.mxu0 %v121
  %365 = vmatprep.subr.mxu0 0.0
  %366 = vmatpush1.msra.mxu0 %v122
  %367 = vmatprep.subr.mxu0 0.0
  %368 = vmatpush1.msra.mxu0 %v123
  %369 = vmatprep.subr.mxu0 0.0
  %370 = vmatpush1.msra.mxu0 %v124
  %371 = vmatprep.subr.mxu0 0.0
  %372 = vmatpush1.msra.mxu0 %v125
  %373 = vmatprep.subr.mxu0 0.0
  %374 = vmatpush1.msra.mxu0 %v126
  %375 = vmatprep.mubr.f32.mxu0 %v20
  %376 = vmatmul.mubr.f32.gmra.mrb[0].mxu0 %v19
  %v377 = vpop.f32.mrb[0].mxu0
  %v378 = vadd.f32 %v303, %v377
  %v379 = vpop.f32.mrb[0].mxu0
  %380 = vmatprep.mubr.f32.mxu0 %v28
  %381 = vmatmul.mubr.f32.gmra.mrb[0].mxu0 %v27
  %v382 = vpop.f32.mrb[0].mxu0
  %v383 = vadd.f32 %v308, %v382
  %v384 = vpop.f32.mrb[0].mxu0
  %385 = vdwg.mxu0
  %386 = vmatprep.subr.mxu0 0.0
  %387 = vmatpush1.msra.mxu0 %v127
  %388 = vmatprep.subr.mxu0 0.0
  %389 = vmatpush1.msra.mxu0 %v128
  %390 = vmatprep.subr.mxu0 0.0
  %391 = vmatpush1.msra.mxu0 %v129
  %392 = vmatprep.subr.mxu0 0.0
  %393 = vmatpush1.msra.mxu0 %v130
  %394 = vmatprep.subr.mxu0 0.0
  %395 = vmatpush1.msra.mxu0 %v131
  %396 = vmatprep.subr.mxu0 0.0
  %397 = vmatpush1.msra.mxu0 %v132
  %398 = vmatprep.subr.mxu0 0.0
  %399 = vmatpush1.msra.mxu0 %v133
  %400 = vmatprep.subr.mxu0 0.0
  %401 = vmatpush1.msra.mxu0 %v134
  %402 = vmatprep.subr.mxu0 0.0
  %403 = vmatpush1.msra.mxu0 %v135
  %404 = vmatprep.subr.mxu0 0.0
  %405 = vmatpush1.msra.mxu0 %v136
  %406 = vmatprep.subr.mxu0 0.0
  %407 = vmatpush1.msra.mxu0 %v137
  %408 = vmatprep.subr.mxu0 0.0
  %409 = vmatpush1.msra.mxu0 %v138
  %410 = vmatprep.subr.mxu0 0.0
  %411 = vmatpush1.msra.mxu0 %v139
  %412 = vmatprep.subr.mxu0 0.0
  %413 = vmatpush1.msra.mxu0 %v140
  %414 = vmatprep.subr.mxu0 0.0
  %415 = vmatpush1.msra.mxu0 %v141
  %416 = vmatprep.subr.mxu0 0.0
  %417 = vmatpush1.msra.mxu0 %v142
  %418 = vmatprep.subr.mxu0 0.0
  %419 = vmatpush1.msra.mxu0 %v143
  %420 = vmatprep.subr.mxu0 0.0
  %421 = vmatpush1.msra.mxu0 %v144
  %422 = vmatprep.subr.mxu0 0.0
  %423 = vmatpush1.msra.mxu0 %v145
  %424 = vmatprep.subr.mxu0 0.0
  %425 = vmatpush1.msra.mxu0 %v146
  %426 = vmatprep.subr.mxu0 0.0
  %427 = vmatpush1.msra.mxu0 %v147
  %428 = vmatprep.subr.mxu0 0.0
  %429 = vmatpush1.msra.mxu0 %v148
  %430 = vmatprep.subr.mxu0 0.0
  %431 = vmatpush1.msra.mxu0 %v149
  %432 = vmatprep.subr.mxu0 0.0
  %433 = vmatpush1.msra.mxu0 %v150
  %434 = vmatprep.subr.mxu0 0.0
  %435 = vmatpush1.msra.mxu0 %v151
  %436 = vmatprep.subr.mxu0 0.0
  %437 = vmatpush1.msra.mxu0 %v152
  %438 = vmatprep.subr.mxu0 0.0
  %439 = vmatpush1.msra.mxu0 %v153
  %440 = vmatprep.subr.mxu0 0.0
  %441 = vmatpush1.msra.mxu0 %v154
  %442 = vmatprep.subr.mxu0 0.0
  %443 = vmatpush1.msra.mxu0 %v155
  %444 = vmatprep.subr.mxu0 0.0
  %445 = vmatpush1.msra.mxu0 %v156
  %446 = vmatprep.subr.mxu0 0.0
  %447 = vmatpush1.msra.mxu0 %v157
  %448 = vmatprep.subr.mxu0 0.0
  %449 = vmatpush1.msra.mxu0 %v158
  %450 = vmatprep.mubr.f32.mxu0 %v22
  %451 = vmatmul.mubr.f32.gmra.mrb[0].mxu0 %v21
  %v452 = vpop.f32.mrb[0].mxu0
  %v453 = vadd.f32 %v378, %v452
  %v454 = vpop.f32.mrb[0].mxu0
  %455 = vmatprep.mubr.f32.mxu0 %v30
  %456 = vmatmul.mubr.f32.gmra.mrb[0].mxu0 %v29
  %v457 = vpop.f32.mrb[0].mxu0
  %v458 = vadd.f32 %v383, %v457
  %v459 = vpop.f32.mrb[0].mxu0
  %460 = vdwg.mxu0
  %v461 = vxor.u32 %v453, 2147483648
  %v462 = vxor.u32 %v458, 2147483648
  %v463 = vmul.f32 %v461, 1.442695
  %v464 = vpow.pop %v463
  %v465 = vmul.f32 %v462, 1.442695
  %v466 = vpow.pop %v465
  %v467 = vadd.f32 %v464, 1.0
  %v468 = vadd.f32 %v466, 1.0
  %v469 = vrcp.pop %v467
  %v470 = vmul.f32 1.0, %v469
  %v471 = vrcp.pop %v468
  %v472 = vmul.f32 1.0, %v471
  %vm473 = vcmask 7168
  %474 = vst.msk [vmem:[%s3] sm:$0xff] %vm473, %v470
  %475 = vst.msk [vmem:[%s3 + $0x8] sm:$0xff] %vm473, %v472
  // Predicated region
  $region14: #{tpu_custom_call.1} parent=0 // pred_check
    _
  $region15: #{tpu_custom_call.1} parent=0 // pred_check_branch
    %477 = sbr.rel (0) target = $region17
  $region16: #{tpu_custom_call.1} parent=0 // pred_region
    _
  $region17: #{tpu_custom_call.1} parent=0 // pred_fallthru
    _
  // Predicated region
  $region18: #{tpu_custom_call.1} parent=0 // pred_check
    _
  $region19: #{tpu_custom_call.1} parent=0 // pred_check_branch
    %479 = sbr.rel (0) target = $region21
  $region20: #{tpu_custom_call.1} parent=0 // pred_region
    _
  $region21: #{tpu_custom_call.1} parent=0 // pred_fallthru
    _

</llo_original>
